<compile_context>
chip_gen: v7x
topology: tpu7x:2x2x1
jax: 0.10.0
libtpu: 0.0.40
codegen_flags: <defaults>
</compile_context>

<pallas_src>
import jax
import jax.numpy as jnp
from jax.experimental import pallas as pl
from jax.experimental.pallas import tpu as pltpu


def _gelu_tanh(x):
    # Matches torch.nn.functional.gelu(x, approximate='tanh'); done in f32.
    c = 0.7978845608028654  # sqrt(2/pi)
    return 0.5 * x * (1.0 + jnp.tanh(c * (x + 0.044715 * x * x * x)))


def sparse_mlp_kernel(eids_ref, x_ref, w1_ref, w2_ref, o_ref, acc_ref):
    # x_ref : (BT, H)   token block t (all tokens belong to one expert)
    # w1_ref: (H, TF)   ffn-tile f of that expert's W1 slice   (sdd piece)
    # w2_ref: (TF, H)   ffn-tile f of that expert's W2 slice   (dsd piece)
    # acc_ref: (BT, H)  f32 accumulator over the ffn tiles
    f = pl.program_id(1)

    @pl.when(f == 0)
    def _():
        acc_ref[...] = jnp.zeros_like(acc_ref)

    h = jnp.dot(x_ref[...], w1_ref[...], preferred_element_type=jnp.float32)
    g = _gelu_tanh(h)
    acc_ref[...] += jnp.dot(
        g.astype(w2_ref.dtype), w2_ref[...], preferred_element_type=jnp.float32
    )

    @pl.when(f == pl.num_programs(1) - 1)
    def _():
        o_ref[...] = acc_ref[...].astype(o_ref.dtype)


def sparse_mlp(x, w1, w2, block_expert_ids, *, block_tokens, ffn, ffn_tile):
    """Block-sparse MoE MLP: per token block, use only that block's expert."""
    T, H = x.shape
    EF = w1.shape[1]
    assert w1.shape == (H, EF) and w2.shape == (EF, H)
    assert EF % ffn == 0
    n_experts = EF // ffn
    assert T % block_tokens == 0
    assert ffn % ffn_tile == 0
    assert H % 128 == 0, "hidden must be a lane multiple for unmasked stores"
    assert block_tokens % 8 == 0 and ffn_tile % 128 == 0

    ffn_tiles = ffn // ffn_tile
    n_token_blocks = T // block_tokens

    # Guard against out-of-range expert ids: Pallas does not bounds-check the
    # block indices produced by index_maps.
    block_expert_ids = jnp.clip(
        block_expert_ids.astype(jnp.int32), 0, n_experts - 1
    )

    grid = (n_token_blocks, ffn_tiles)

    def x_map(t, f, eids):
        return (t, 0)

    def w1_map(t, f, eids):
        return (0, eids[t] * ffn_tiles + f)

    def w2_map(t, f, eids):
        return (eids[t] * ffn_tiles + f, 0)

    def o_map(t, f, eids):
        return (t, 0)

    itemsize = jnp.dtype(x.dtype).itemsize
    # Double-buffered inputs + double-buffered output + f32 accumulator.
    vmem_bytes = 2 * (block_tokens * H + H * ffn_tile + ffn_tile * H) * itemsize
    vmem_bytes += 2 * block_tokens * H * itemsize
    vmem_bytes += block_tokens * H * 4
    vmem_limit = min(max(int(1.5 * vmem_bytes), 32 << 20), 100 << 20)

    flops = 4 * T * H * ffn                     # two matmuls per token, one expert each
    transcendentals = T * ffn                   # one tanh per intermediate element
    bytes_accessed = (
        2 * T * H * itemsize                    # x in + y out
        + n_token_blocks * 2 * H * ffn * itemsize  # streamed expert weight slices
    )

    return pl.pallas_call(
        sparse_mlp_kernel,
        out_shape=jax.ShapeDtypeStruct((T, H), x.dtype),
        grid_spec=pltpu.PrefetchScalarGridSpec(
            num_scalar_prefetch=1,              # block_expert_ids -> SMEM
            grid=grid,
            in_specs=[
                pl.BlockSpec((block_tokens, H), x_map),
                pl.BlockSpec((H, ffn_tile), w1_map),
                pl.BlockSpec((ffn_tile, H), w2_map),
            ],
            out_specs=pl.BlockSpec((block_tokens, H), o_map),
            scratch_shapes=[pltpu.VMEM((block_tokens, H), jnp.float32)],
        ),
        compiler_params=pltpu.CompilerParams(
            # token axis independent (megacore shard on v7x), ffn axis is the
            # accumulation axis.
            dimension_semantics=("parallel", "arbitrary"),
            vmem_limit_bytes=vmem_limit,
        ),
        cost_estimate=pl.CostEstimate(
            flops=flops,
            transcendentals=transcendentals,
            bytes_accessed=bytes_accessed,
        ),
    )(block_expert_ids, x, w1, w2)


def sparse_mlp_reference(x, w1, w2, block_expert_ids, *, block_tokens, ffn):
    outs = []
    for i in range(block_expert_ids.shape[0]):
        e = int(block_expert_ids[i])
        xb = x[i * block_tokens:(i + 1) * block_tokens]
        h = jnp.dot(
            xb, w1[:, e * ffn:(e + 1) * ffn], preferred_element_type=jnp.float32
        )
        g = _gelu_tanh(h).astype(w2.dtype)
        outs.append(
            jnp.dot(g, w2[e * ffn:(e + 1) * ffn, :],
                    preferred_element_type=jnp.float32)
        )
    return jnp.concatenate(outs, axis=0)


if __name__ == "__main__":
    # Small synthetic config (no checkpoint load), but MXU/lane aligned:
    #   hidden_size = 128, per-expert intermediate (ffn) = 256, ffn tile = 128,
    #   experts_per_rank = 4, tokens = 256, token block = 128.
    HIDDEN = 128
    FFN = 256
    TF = 128
    N_EXPERTS = 4
    BT = 128
    TOKENS = 256

    key = jax.random.PRNGKey(0)
    kx, k1, k2 = jax.random.split(key, 3)

    # bf16 operands (f32 accumulation inside the kernel), as on v6e/v7x MXU.
    x = jax.random.normal(kx, (TOKENS, HIDDEN), dtype=jnp.float32).astype(jnp.bfloat16)
    # W1 already transposed as in the tp_pg.size()==1 branch: (H, E*F)
    w1 = (0.02 * jax.random.normal(
        k1, (HIDDEN, N_EXPERTS * FFN), dtype=jnp.float32)).astype(jnp.bfloat16)
    # W2 as nn.Linear(hidden, E*F).weight: (E*F, H)
    w2 = (0.02 * jax.random.normal(
        k2, (N_EXPERTS * FFN, HIDDEN), dtype=jnp.float32)).astype(jnp.bfloat16)

    # "topo": tokens assumed pre-grouped by expert; one expert id per token block.
    block_expert_ids = jnp.array([1, 3], dtype=jnp.int32)  # TOKENS // BT entries

    y = sparse_mlp(
        x, w1, w2, block_expert_ids, block_tokens=BT, ffn=FFN, ffn_tile=TF
    )
    y = jax.block_until_ready(y)

    y_ref = sparse_mlp_reference(
        x, w1, w2, jax.device_get(block_expert_ids), block_tokens=BT, ffn=FFN
    )

    assert y.shape == (TOKENS, HIDDEN)
    err = float(jnp.max(jnp.abs(y.astype(jnp.float32) - y_ref.astype(jnp.float32))))
    assert err < 2e-2, f"mismatch vs reference: max abs err {err}"

    print("KERNEL_OK")
</pallas_src>

<mosaic_0001>
module attributes {stable_mosaic.version = 11 : i64} {
  func.func @sparse_mlp_kernel(%arg0: i32, %arg1: i32, %arg2: memref<2xi32, #tpu.memory_space<smem>>, %arg3: memref<128x128xbf16, #tpu.memory_space<vmem>>, %arg4: memref<128x128xbf16, #tpu.memory_space<vmem>>, %arg5: memref<128x128xbf16, #tpu.memory_space<vmem>>, %arg6: memref<128x128xbf16, #tpu.memory_space<vmem>>, %arg7: memref<128x128xf32, #tpu.memory_space<vmem>>) attributes {dimension_semantics = [#tpu.dimension_semantics<parallel>, #tpu.dimension_semantics<arbitrary>], iteration_bounds = array<i64: 2, 2>, scalar_prefetch = 1 : i64, scratch_operands = 1 : i64, tpu.core_type = #tpu.core_type<tc>, window_params = [{transform_indices = @transform_0, window_bounds = array<i64: 128, 128>}, {transform_indices = @transform_1, window_bounds = array<i64: 128, 128>}, {transform_indices = @transform_2, window_bounds = array<i64: 128, 128>}, {transform_indices = @transform_3, window_bounds = array<i64: 128, 128>}]} {
    %c0_i32 = arith.constant 0 : i32
    %0 = arith.cmpi eq, %arg1, %c0_i32 : i32
    %1 = arith.extui %0 : i1 to i32
    %c0_i32_0 = arith.constant 0 : i32
    %2 = arith.cmpi ne, %1, %c0_i32_0 : i32
    scf.if %2 {
      %cst_16 = arith.constant 0.000000e+00 : f32
      %28 = vector.broadcast %cst_16 : f32 to vector<128x128xf32>
      %c0_17 = arith.constant 0 : index
      %c0_18 = arith.constant 0 : index
      %29 = vector.load %arg7[%c0_17, %c0_18] : memref<128x128xf32, #tpu.memory_space<vmem>>, vector<128x128xf32>
      tpu.vector_store %arg7[%c0_17, %c0_18], %28 {strides = array<i32>} : memref<128x128xf32, #tpu.memory_space<vmem>>, vector<128x128xf32>,
    } else {
    }
    %c0 = arith.constant 0 : index
    %c0_1 = arith.constant 0 : index
    %3 = vector.load %arg3[%c0, %c0_1] : memref<128x128xbf16, #tpu.memory_space<vmem>>, vector<128x128xbf16>
    %c0_2 = arith.constant 0 : index
    %c0_3 = arith.constant 0 : index
    %4 = vector.load %arg4[%c0_2, %c0_3] : memref<128x128xbf16, #tpu.memory_space<vmem>>, vector<128x128xbf16>
    %cst = arith.constant dense<0.000000e+00> : vector<128x128xf32>
    %5 = tpu.matmul %3, %4, %cst {dimension_numbers = #tpu.dot_dimension_numbers<[1], [0], [0], [1], [0, 0, 1, 1], [], []>} : vector<128x128xbf16>, vector<128x128xbf16>, vector<128x128xf32> -> vector<128x128xf32>
    %cst_4 = arith.constant 5.000000e-01 : f32
    %6 = vector.broadcast %cst_4 : f32 to vector<128x128xf32>
    %7 = arith.mulf %6, %5 : vector<128x128xf32>
    %cst_5 = arith.constant 4.471500e-02 : f32
    %8 = vector.broadcast %cst_5 : f32 to vector<128x128xf32>
    %9 = arith.mulf %8, %5 : vector<128x128xf32>
    %10 = arith.mulf %9, %5 : vector<128x128xf32>
    %11 = arith.mulf %10, %5 : vector<128x128xf32>
    %12 = arith.addf %5, %11 : vector<128x128xf32>
    %cst_6 = arith.constant 0.797884583 : f32
    %13 = vector.broadcast %cst_6 : f32 to vector<128x128xf32>
    %14 = arith.mulf %13, %12 : vector<128x128xf32>
    %15 = math.tanh %14 : vector<128x128xf32>
    %cst_7 = arith.constant 1.000000e+00 : f32
    %16 = vector.broadcast %cst_7 : f32 to vector<128x128xf32>
    %17 = arith.addf %16, %15 : vector<128x128xf32>
    %18 = arith.mulf %7, %17 : vector<128x128xf32>
    %c0_8 = arith.constant 0 : index
    %c0_9 = arith.constant 0 : index
    %19 = vector.load %arg7[%c0_8, %c0_9] : memref<128x128xf32, #tpu.memory_space<vmem>>, vector<128x128xf32>
    %20 = arith.truncf %18 : vector<128x128xf32> to vector<128x128xbf16>
    %c0_10 = arith.constant 0 : index
    %c0_11 = arith.constant 0 : index
    %21 = vector.load %arg5[%c0_10, %c0_11] : memref<128x128xbf16, #tpu.memory_space<vmem>>, vector<128x128xbf16>
    %cst_12 = arith.constant dense<0.000000e+00> : vector<128x128xf32>
    %22 = tpu.matmul %20, %21, %cst_12 {dimension_numbers = #tpu.dot_dimension_numbers<[1], [0], [0], [1], [0, 0, 1, 1], [], []>} : vector<128x128xbf16>, vector<128x128xbf16>, vector<128x128xf32> -> vector<128x128xf32>
    %23 = arith.addf %19, %22 : vector<128x128xf32>
    %c0_13 = arith.constant 0 : index
    %c0_14 = arith.constant 0 : index
    %24 = vector.load %arg7[%c0_13, %c0_14] : memref<128x128xf32, #tpu.memory_space<vmem>>, vector<128x128xf32>
    tpu.vector_store %arg7[%c0_13, %c0_14], %23 {strides = array<i32>} : memref<128x128xf32, #tpu.memory_space<vmem>>, vector<128x128xf32>,
    %c1_i32 = arith.constant 1 : i32
    %25 = arith.cmpi eq, %arg1, %c1_i32 : i32
    %26 = arith.extui %25 : i1 to i32
    %c0_i32_15 = arith.constant 0 : i32
    %27 = arith.cmpi ne, %26, %c0_i32_15 : i32
    scf.if %27 {
      %c0_16 = arith.constant 0 : index
      %c0_17 = arith.constant 0 : index
      %28 = vector.load %arg7[%c0_16, %c0_17] : memref<128x128xf32, #tpu.memory_space<vmem>>, vector<128x128xf32>
      %29 = arith.truncf %28 : vector<128x128xf32> to vector<128x128xbf16>
      %c0_18 = arith.constant 0 : index
      %c0_19 = arith.constant 0 : index
      %30 = vector.load %arg6[%c0_18, %c0_19] : memref<128x128xbf16, #tpu.memory_space<vmem>>, vector<128x128xbf16>
      tpu.vector_store %arg6[%c0_18, %c0_19], %29 {strides = array<i32>} : memref<128x128xbf16, #tpu.memory_space<vmem>>, vector<128x128xbf16>,
    } else {
    }
    return
  }
  func.func @transform_0(%arg0: i32, %arg1: i32, %arg2: memref<2xi32, #tpu.memory_space<smem>>) -> (i32, i32) {
    %c0_i32 = arith.constant 0 : i32
    %c0_i32_0 = arith.constant 0 : i32
    return %arg0, %c0_i32 : i32, i32
  }
  func.func @transform_1(%arg0: i32, %arg1: i32, %arg2: memref<2xi32, #tpu.memory_space<smem>>) -> (i32, i32) {
    %0 = arith.index_cast %arg0 : i32 to index
    %1 = memref.load %arg2[%0] : memref<2xi32, #tpu.memory_space<smem>>
    %c2_i32 = arith.constant 2 : i32
    %2 = arith.muli %1, %c2_i32 : i32
    %3 = arith.addi %2, %arg1 : i32
    %c0_i32 = arith.constant 0 : i32
    %c0_i32_0 = arith.constant 0 : i32
    return %c0_i32, %3 : i32, i32
  }
  func.func @transform_2(%arg0: i32, %arg1: i32, %arg2: memref<2xi32, #tpu.memory_space<smem>>) -> (i32, i32) {
    %0 = arith.index_cast %arg0 : i32 to index
    %1 = memref.load %arg2[%0] : memref<2xi32, #tpu.memory_space<smem>>
    %c2_i32 = arith.constant 2 : i32
    %2 = arith.muli %1, %c2_i32 : i32
    %3 = arith.addi %2, %arg1 : i32
    %c0_i32 = arith.constant 0 : i32
    %c0_i32_0 = arith.constant 0 : i32
    return %3, %c0_i32 : i32, i32
  }
  func.func @transform_3(%arg0: i32, %arg1: i32, %arg2: memref<2xi32, #tpu.memory_space<smem>>) -> (i32, i32) {
    %c0_i32 = arith.constant 0 : i32
    %c0_i32_0 = arith.constant 0 : i32
    return %arg0, %c0_i32 : i32, i32
  }
}

</mosaic_0001>

<llo_original>
// kernel: tpu_custom_call.1
$region0: #{tpu_custom_call.1}
  #allocation0 [shape = 'u32[]', space=smem, size = 0x4, offset = 0x4, fixed_abs, tag = 'smem constant byte address 0x4 - core index']
  #allocation1 [shape = 'u32[144,128]{1,0:T(1,128)}', space=vmem, size = 0x12000, scoped, tag = 'internal scratch']
  #allocation2 [shape = 'f32[128,128]{1,0:T(8,128)}', space=vmem, size = 0x10000, scoped, tag = 'scratch operand']
  #allocation3 [shape = 's32[1]{0}', space=sflag, size = 0x4, scoped, tag = 'scoped memory for tpu_custom_call.1']
  #allocation4 [shape = 'u8[512]{0}', space=smem, size = 0x200, scoped, tag = 'prefetched SMEM operand 0']
  %s0 = inlined_call_operand.hbm [shape: s32[2], index: 0, kind: input, shape index: {}]
  %s1 = inlined_call_operand.hbm [shape: bf16[256,128], index: 1, kind: input, shape index: {}]
  %s2 = inlined_call_operand.hbm [shape: bf16[128,1024], index: 2, kind: input, shape index: {}]
  %s3 = inlined_call_operand.hbm [shape: bf16[1024,128], index: 3, kind: input, shape index: {}]
  %s4 = inlined_call_operand.hbm [shape: bf16[256,128], index: 4, kind: output, shape index: {}]
  %s5 = sld [smem:[#allocation0]]
  $region65: #{tpu_custom_call.1} parent=0
    _
  %s7 = ssub.s32 1, %s5
  %s8 = scalar_select 0, %s7, %s5
  %10 = dma.hbm_to_smem %s0, 16, [#allocation4], [#allocation3]
  %11 = dma.done [#allocation3], 16
  %12 = sfence
  $region1: #{tpu_custom_call.1} parent=0
    #allocation5 [shape = 'u8[65536]{0}', space=vmem, size = 0x10000, scoped, tag = 'input window, operand 1']
    #allocation6 [shape = 's32[2]{0}', space=sflag, size = 0x8, scoped, tag = 'scoped memory for tpu_custom_call.1']
    #allocation7 [shape = 's32[2]{0}', space=sflag, size = 0x8, scoped, tag = 'scoped memory for tpu_custom_call.1']
    #allocation8 [shape = 'u8[65536]{0}', space=vmem, size = 0x10000, scoped, tag = 'input window, operand 2']
    #allocation9 [shape = 's32[2]{0}', space=sflag, size = 0x8, scoped, tag = 'scoped memory for tpu_custom_call.1']
    #allocation10 [shape = 'u8[65536]{0}', space=vmem, size = 0x10000, scoped, tag = 'input window, operand 3']
    #allocation11 [shape = 'u8[65536]{0}', space=vmem, size = 0x10000, scoped, tag = 'output window, operand 0']
    %13 = vsyncpa [#allocation6], 0
    %s14 = scalar_lea.sflag [#allocation6], 1
    %15 = vsyncpa %s14, 0
    %16 = vsyncpa [#allocation9], 0
    %s17 = scalar_lea.sflag [#allocation9], 1
    %18 = vsyncpa %s17, 0
    %19 = vsyncpa [#allocation7], 0
    %s20 = scalar_lea.sflag [#allocation7], 1
    %21 = vsyncpa %s20, 0
    loop: start=0, step=1, limit=6
    $region2: #{tpu_custom_call.1} parent=1 // loop_pre_header
      _
    $region3: #{tpu_custom_call.1} parent=1 // loop_header
      %s23 = sphi 0, %s27
      %p24 = scmp.ge.s32.totalorder %s23, 6
      %s30 = sphi 0, %s42
      %s31 = sphi 0, %s38
      %s32 = sphi 0, %s30
      %s33 = sphi 0, %s31
      %s34 = sphi 0, %s32
      %s35 = sphi 0, %s33
      %s45 = sphi 0, %s47
      %s48 = sphi 0, %s45
      %s49 = sphi 0, %s48
      %s65 = sphi 0, %s49
      %s77 = sphi 0, %s79
      %s80 = sphi 0, %s77
      %s81 = sphi 0, %s80
      %s97 = sphi 0, %s81
      %s109 = sphi 0, %s111
      %s112 = sphi 0, %s109
      %s113 = sphi 0, %s112
      %s129 = sphi 0, %s113
      %s135 = sphi 0, %s137
      %s138 = sphi 0, %s135
      %s139 = sphi 0, %s138
      %s155 = sphi 0, %s139
    $region4: #{tpu_custom_call.1} parent=1 // loop_header_branch
      %26 = sbr.rel (%p24) target = $region8
    $region5: #{tpu_custom_call.1} parent=1 // loop_body
      %s28 = ssub.s32 %s23, 1
      %s29 = ssub.s32 %s23, 2
      %s36 = sadd.s32 1, %s31
      %p37 = scmp.ge.s32.totalorder %s36, 2
      %s38 = scalar_select %p37, 0, %s36
      %s39 = sadd.s32 1, %s30
      %s40 = scalar_select %p37, %s39, %s30
      %p41 = scmp.ge.s32.totalorder %s40, 2
      %s42 = scalar_select %p41, 0, %s40
      %s43 = ssub.s32 %s30, %s42
      %p44 = scmp.eq.s32.totalorder %s43, 0
      %s46 = sadd.s32 %s45, 1
      %s47 = scalar_select %p44, %s45, %s46
      %p50 = pneg %p44
      %p51 = scmp.eq.s32.totalorder %s23, 3
      %p52 = por %p50, %p51
      %p53 = scmp.ne.s32.totalorder %s45, %s48
      %p54 = scmp.eq.s32.totalorder %s23, 0
      %p55 = por %p53, %p54
      %p56 = scmp.ne.s32.totalorder %s45, %s48
      %p57 = scmp.eq.s32.totalorder %s28, 3
      %p58 = por %p56, %p57
      %p59 = scmp.ne.s32.totalorder %s48, %s49
      %p60 = scmp.eq.s32.totalorder %s28, 0
      %p61 = por %p59, %p60
      %p62 = scmp.ne.s32.totalorder %s48, %s49
      %p63 = scmp.eq.s32.totalorder %s29, 3
      %p64 = por %p62, %p63
      %p66 = scmp.ne.s32.totalorder %s49, %s65
      %p67 = scmp.eq.s32.totalorder %s29, 0
      %p68 = por %p66, %p67
      %s69 = sld [smem:[#allocation4 + %s30]]
      %s70 = smul.u32 %s69, 2
      %s71 = sadd.s32 %s70, %s31
      %s72 = sld [smem:[#allocation4 + %s42]]
      %s73 = smul.u32 %s72, 2
      %s74 = sadd.s32 %s73, %s38
      %s75 = ssub.s32 %s71, %s74
      %p76 = scmp.eq.s32.totalorder %s75, 0
      %s78 = sadd.s32 %s77, 1
      %s79 = scalar_select %p76, %s77, %s78
      %p82 = pneg %p76
      %p83 = scmp.eq.s32.totalorder %s23, 3
      %p84 = por %p82, %p83
      %p85 = scmp.ne.s32.totalorder %s77, %s80
      %p86 = scmp.eq.s32.totalorder %s23, 0
      %p87 = por %p85, %p86
      %p88 = scmp.ne.s32.totalorder %s77, %s80
      %p89 = scmp.eq.s32.totalorder %s28, 3
      %p90 = por %p88, %p89
      %p91 = scmp.ne.s32.totalorder %s80, %s81
      %p92 = scmp.eq.s32.totalorder %s28, 0
      %p93 = por %p91, %p92
      %p94 = scmp.ne.s32.totalorder %s80, %s81
      %p95 = scmp.eq.s32.totalorder %s29, 3
      %p96 = por %p94, %p95
      %p98 = scmp.ne.s32.totalorder %s81, %s97
      %p99 = scmp.eq.s32.totalorder %s29, 0
      %p100 = por %p98, %p99
      %s101 = sld [smem:[#allocation4 + %s30]]
      %s102 = smul.u32 %s101, 2
      %s103 = sadd.s32 %s102, %s31
      %s104 = sld [smem:[#allocation4 + %s42]]
      %s105 = smul.u32 %s104, 2
      %s106 = sadd.s32 %s105, %s38
      %s107 = ssub.s32 %s103, %s106
      %p108 = scmp.eq.s32.totalorder %s107, 0
      %s110 = sadd.s32 %s109, 1
      %s111 = scalar_select %p108, %s109, %s110
      %p114 = pneg %p108
      %p115 = scmp.eq.s32.totalorder %s23, 3
      %p116 = por %p114, %p115
      %p117 = scmp.ne.s32.totalorder %s109, %s112
      %p118 = scmp.eq.s32.totalorder %s23, 0
      %p119 = por %p117, %p118
      %p120 = scmp.ne.s32.totalorder %s109, %s112
      %p121 = scmp.eq.s32.totalorder %s28, 3
      %p122 = por %p120, %p121
      %p123 = scmp.ne.s32.totalorder %s112, %s113
      %p124 = scmp.eq.s32.totalorder %s28, 0
      %p125 = por %p123, %p124
      %p126 = scmp.ne.s32.totalorder %s112, %s113
      %p127 = scmp.eq.s32.totalorder %s29, 3
      %p128 = por %p126, %p127
      %p130 = scmp.ne.s32.totalorder %s113, %s129
      %p131 = scmp.eq.s32.totalorder %s29, 0
      %p132 = por %p130, %p131
      %s133 = ssub.s32 %s30, %s42
      %p134 = scmp.eq.s32.totalorder %s133, 0
      %s136 = sadd.s32 %s135, 1
      %s137 = scalar_select %p134, %s135, %s136
      %p140 = pneg %p134
      %p141 = scmp.eq.s32.totalorder %s23, 3
      %p142 = por %p140, %p141
      %p143 = scmp.ne.s32.totalorder %s135, %s138
      %p144 = scmp.eq.s32.totalorder %s23, 0
      %p145 = por %p143, %p144
      %p146 = scmp.ne.s32.totalorder %s135, %s138
      %p147 = scmp.eq.s32.totalorder %s28, 3
      %p148 = por %p146, %p147
      %p149 = scmp.ne.s32.totalorder %s138, %s139
      %p150 = scmp.eq.s32.totalorder %s28, 0
      %p151 = por %p149, %p150
      %p152 = scmp.ne.s32.totalorder %s138, %s139
      %p153 = scmp.eq.s32.totalorder %s29, 3
      %p154 = por %p152, %p153
      %p156 = scmp.ne.s32.totalorder %s139, %s155
      %p157 = scmp.eq.s32.totalorder %s29, 0
      %p158 = por %p156, %p157
      %p159 = scmp.le.s32.totalorder 1, %s23
      %p160 = scmp.lt.s32.totalorder %s23, 5
      %p161 = pnand %p159, %p160
      %p162 = pneg %p161
      // Predicated region
      $region9: #{tpu_custom_call.1} parent=5 // pred_check
        _
      $region10: #{tpu_custom_call.1} parent=5 // pred_check_branch
        %164 = sbr.rel (%p161) target = $region12
      $region11: #{tpu_custom_call.1} parent=5 // pred_region
        %s165 = ssub.s32 %s23, 1
      $region12: #{tpu_custom_call.1} parent=5 // pred_fallthru
        _
      %p166 = scmp.lt.s32.totalorder %s23, 4
      // Predicated region
      $region13: #{tpu_custom_call.1} parent=5 // pred_check
        %p167 = pneg %p166
      $region14: #{tpu_custom_call.1} parent=5 // pred_check_branch
        %169 = sbr.rel (%p167) target = $region16
      $region15: #{tpu_custom_call.1} parent=5 // pred_region
        // Predicated region
        $region17: #{tpu_custom_call.1} parent=15 // pred_check
          %p170 = pneg %p55
        $region18: #{tpu_custom_call.1} parent=15 // pred_check_branch
          %172 = sbr.rel (%p170) target = $region20
        $region19: #{tpu_custom_call.1} parent=15 // pred_region
          %s173 = sand.u32 %s45, 1
          %s174 = scalar_lea.sflag [#allocation6], %s173
          %s175 = sand.u32 %s45, 1
          %s176 = smul.addr %s175, 64
          %s177 = scalar_lea.vmem [#allocation5], %s176
          %s178 = smul.u32 16, %s30
          %s180 = ssub.s32 1024, 1024
          %181 = vsyncadd %s174, %s180
          %s182 = smul.addr %s178, 64
          %s183 = scalar_lea.hbm %s1, %s182
          %s184 = sshll.u32 %s177, 4
          %s185 = int_to_ptr.vmem [resolvable:$true] %s184
          %190 = dma.hbm_to_vmem [thread:$0]  %s183, 1024, %s185, %s174, 64, 64, 4
        $region20: #{tpu_custom_call.1} parent=15 // pred_fallthru
          _
        // Predicated region
        $region21: #{tpu_custom_call.1} parent=15 // pred_check
          %p191 = pneg %p87
        $region22: #{tpu_custom_call.1} parent=15 // pred_check_branch
          %193 = sbr.rel (%p191) target = $region24
        $region23: #{tpu_custom_call.1} parent=15 // pred_region
          %s194 = sand.u32 %s23, 1
          %s195 = scalar_lea.sflag [#allocation9], %s194
          %s196 = sand.u32 %s77, 1
          %s197 = smul.addr %s196, 64
          %s198 = scalar_lea.vmem [#allocation8], %s197
          %s199 = sld [smem:[#allocation4 + %s30]]
          %s200 = smul.u32 %s199, 2
          %s201 = sadd.s32 %s200, %s31
          %s203 = ssub.s32 1024, 1024
          %204 = vsyncadd %s195, %s203
          %s205 = smul.addr %s201, 64
          %s206 = scalar_lea.hbm %s2, %s205
          %s207 = sshll.u32 %s198, 4
          %s208 = int_to_ptr.vmem [resolvable:$true] %s207
          %213 = dma.hbm_to_vmem [thread:$0]  %s206, 1024, %s208, %s195, 512, 64, 4
        $region24: #{tpu_custom_call.1} parent=15 // pred_fallthru
          _
        // Predicated region
        $region25: #{tpu_custom_call.1} parent=15 // pred_check
          %p214 = pneg %p119
        $region26: #{tpu_custom_call.1} parent=15 // pred_check_branch
          %216 = sbr.rel (%p214) target = $region28
        $region27: #{tpu_custom_call.1} parent=15 // pred_region
          %s217 = sand.u32 %s23, 1
          %s218 = scalar_lea.sflag [#allocation9], %s217
          %s219 = sand.u32 %s109, 1
          %s220 = smul.addr %s219, 64
          %s221 = scalar_lea.vmem [#allocation10], %s220
          %s222 = sld [smem:[#allocation4 + %s30]]
          %s223 = smul.u32 %s222, 2
          %s224 = sadd.s32 %s223, %s31
          %s225 = smul.u32 16, %s224
          %s227 = ssub.s32 1024, 1024
          %228 = vsyncadd %s218, %s227
          %s229 = smul.addr %s225, 64
          %s230 = scalar_lea.hbm %s3, %s229
          %s231 = sshll.u32 %s221, 4
          %s232 = int_to_ptr.vmem [resolvable:$true] %s231
          %237 = dma.hbm_to_vmem [thread:$0]  %s230, 1024, %s232, %s218, 64, 64, 4
        $region28: #{tpu_custom_call.1} parent=15 // pred_fallthru
          _
      $region16: #{tpu_custom_call.1} parent=5 // pred_fallthru
        _
      %p238 = scmp.le.s32.totalorder 1, %s23
      %p239 = scmp.lt.s32.totalorder %s23, 5
      %p240 = pnand %p238, %p239
      %p241 = pneg %p240
      // Predicated region
      $region29: #{tpu_custom_call.1} parent=5 // pred_check
        _
      $region30: #{tpu_custom_call.1} parent=5 // pred_check_branch
        %243 = sbr.rel (%p240) target = $region32
      $region31: #{tpu_custom_call.1} parent=5 // pred_region
        %s244 = ssub.s32 %s23, 1
        %s245 = sand.u32 %s48, 1
        %s246 = scalar_lea.sflag [#allocation6], %s245
        %s247 = sand.u32 %s48, 1
        %s248 = smul.addr %s247, 64
        %s249 = scalar_lea.vmem [#allocation5], %s248
        // Predicated region
        $region33: #{tpu_custom_call.1} parent=31 // pred_check
          %p250 = pneg %p61
        $region34: #{tpu_custom_call.1} parent=31 // pred_check_branch
          %252 = sbr.rel (%p250) target = $region36
        $region35: #{tpu_custom_call.1} parent=31 // pred_region
          %253 = dma.done %s246, 1024
        $region36: #{tpu_custom_call.1} parent=31 // pred_fallthru
          _
        %s254 = sand.u32 %s28, 1
        %s255 = scalar_lea.sflag [#allocation9], %s254
        %s256 = sand.u32 %s80, 1
        %s257 = smul.addr %s256, 64
        %s258 = scalar_lea.vmem [#allocation8], %s257
        // Predicated region
        $region37: #{tpu_custom_call.1} parent=31 // pred_check
          %p259 = pneg %p93
        $region38: #{tpu_custom_call.1} parent=31 // pred_check_branch
          %261 = sbr.rel (%p259) target = $region40
        $region39: #{tpu_custom_call.1} parent=31 // pred_region
          %262 = dma.done %s255, 1024
        $region40: #{tpu_custom_call.1} parent=31 // pred_fallthru
          _
        %s263 = sand.u32 %s28, 1
        %s264 = scalar_lea.sflag [#allocation9], %s263
        %s265 = sand.u32 %s112, 1
        %s266 = smul.addr %s265, 64
        %s267 = scalar_lea.vmem [#allocation10], %s266
        // Predicated region
        $region41: #{tpu_custom_call.1} parent=31 // pred_check
          %p268 = pneg %p125
        $region42: #{tpu_custom_call.1} parent=31 // pred_check_branch
          %270 = sbr.rel (%p268) target = $region44
        $region43: #{tpu_custom_call.1} parent=31 // pred_region
          %271 = dma.done %s264, 1024
        $region44: #{tpu_custom_call.1} parent=31 // pred_fallthru
          _
        %s272 = sand.u32 %s48, 1
        %s273 = scalar_lea.sflag [#allocation6], %s272
        %s274 = sand.u32 %s48, 1
        %s275 = smul.addr %s274, 64
        %s276 = scalar_lea.vmem [#allocation5], %s275
        %p277 = pneg %p61
        %p278 = pneg %p58
        %s279 = sand.u32 %s28, 1
        %s280 = scalar_lea.sflag [#allocation9], %s279
        %s281 = sand.u32 %s80, 1
        %s282 = smul.addr %s281, 64
        %s283 = scalar_lea.vmem [#allocation8], %s282
        %p284 = pneg %p93
        %p285 = pneg %p90
        %s286 = sand.u32 %s28, 1
        %s287 = scalar_lea.sflag [#allocation9], %s286
        %s288 = sand.u32 %s112, 1
        %s289 = smul.addr %s288, 64
        %s290 = scalar_lea.vmem [#allocation10], %s289
        %p291 = pneg %p125
        %p292 = pneg %p122
        %p293 = pneg %p151
        %p294 = pneg %p148
        %s295 = sand.u32 %s138, 1
        %s296 = scalar_lea.sflag [#allocation7], %s295
        %s297 = sand.u32 %s138, 1
        %s298 = smul.addr %s297, 64
        %s299 = scalar_lea.vmem [#allocation11], %s298
        %s300 = smul.u32 16, %s32
        %s301 = sld [smem:[#allocation4 + %s32]]
        %s302 = smul.u32 %s301, 2
        %s303 = sadd.s32 %s302, %s33
        %s304 = sld [smem:[#allocation4 + %s32]]
        %s305 = smul.u32 %s304, 2
        %s306 = sadd.s32 %s305, %s33
        %s307 = smul.u32 16, %s306
        %s308 = smul.u32 16, %s32
        %p310 = scmp.eq.s32.totalorder %s33, 0
        // Predicated region
        $region45: #{tpu_custom_call.1} parent=31 // pred_check
          %p311 = pneg %p310
        $region46: #{tpu_custom_call.1} parent=31 // pred_check_branch
          %313 = sbr.rel (%p311) target = $region48
        $region47: #{tpu_custom_call.1} parent=31 // pred_region
          %314 = vst [vmem:[#allocation2] sm:$0xff] 0.0
          %315 = vst [vmem:[#allocation2 + $0x8] sm:$0xff] 0.0
          %316 = vst [vmem:[#allocation2 + $0x10] sm:$0xff] 0.0
          %317 = vst [vmem:[#allocation2 + $0x18] sm:$0xff] 0.0
          %318 = vst [vmem:[#allocation2 + $0x20] sm:$0xff] 0.0
          %319 = vst [vmem:[#allocation2 + $0x28] sm:$0xff] 0.0
          %320 = vst [vmem:[#allocation2 + $0x30] sm:$0xff] 0.0
          %321 = vst [vmem:[#allocation2 + $0x38] sm:$0xff] 0.0
          %322 = vst [vmem:[#allocation2 + $0x40] sm:$0xff] 0.0
          %323 = vst [vmem:[#allocation2 + $0x48] sm:$0xff] 0.0
          %324 = vst [vmem:[#allocation2 + $0x50] sm:$0xff] 0.0
          %325 = vst [vmem:[#allocation2 + $0x58] sm:$0xff] 0.0
          %326 = vst [vmem:[#allocation2 + $0x60] sm:$0xff] 0.0
          %327 = vst [vmem:[#allocation2 + $0x68] sm:$0xff] 0.0
          %328 = vst [vmem:[#allocation2 + $0x70] sm:$0xff] 0.0
          %329 = vst [vmem:[#allocation2 + $0x78] sm:$0xff] 0.0
        $region48: #{tpu_custom_call.1} parent=31 // pred_fallthru
          _
        %v330 = vld [vmem:[%s249] sm:$0xf]
        %v331 = vld [vmem:[%s249 + $0x4] sm:$0xf]
        %v332 = vld [vmem:[%s249 + $0x8] sm:$0xf]
        %v333 = vld [vmem:[%s249 + $0xc] sm:$0xf]
        %v334 = vld [vmem:[%s249 + $0x10] sm:$0xf]
        %v335 = vld [vmem:[%s249 + $0x14] sm:$0xf]
        %v336 = vld [vmem:[%s249 + $0x18] sm:$0xf]
        %v337 = vld [vmem:[%s249 + $0x1c] sm:$0xf]
        %v338 = vld [vmem:[%s249 + $0x20] sm:$0xf]
        %v339 = vld [vmem:[%s249 + $0x24] sm:$0xf]
        %v340 = vld [vmem:[%s249 + $0x28] sm:$0xf]
        %v341 = vld [vmem:[%s249 + $0x2c] sm:$0xf]
        %v342 = vld [vmem:[%s249 + $0x30] sm:$0xf]
        %v343 = vld [vmem:[%s249 + $0x34] sm:$0xf]
        %v344 = vld [vmem:[%s249 + $0x38] sm:$0xf]
        %v345 = vld [vmem:[%s249 + $0x3c] sm:$0xf]
        %v346 = vld [vmem:[%s258] sm:$0xf]
        %v347 = vld [vmem:[%s258 + $0x4] sm:$0xf]
        %v348 = vld [vmem:[%s258 + $0x8] sm:$0xf]
        %v349 = vld [vmem:[%s258 + $0xc] sm:$0xf]
        %v350 = vld [vmem:[%s258 + $0x10] sm:$0xf]
        %v351 = vld [vmem:[%s258 + $0x14] sm:$0xf]
        %v352 = vld [vmem:[%s258 + $0x18] sm:$0xf]
        %v353 = vld [vmem:[%s258 + $0x1c] sm:$0xf]
        %v354 = vld [vmem:[%s258 + $0x20] sm:$0xf]
        %v355 = vld [vmem:[%s258 + $0x24] sm:$0xf]
        %v356 = vld [vmem:[%s258 + $0x28] sm:$0xf]
        %v357 = vld [vmem:[%s258 + $0x2c] sm:$0xf]
        %v358 = vld [vmem:[%s258 + $0x30] sm:$0xf]
        %v359 = vld [vmem:[%s258 + $0x34] sm:$0xf]
        %v360 = vld [vmem:[%s258 + $0x38] sm:$0xf]
        %v361 = vld [vmem:[%s258 + $0x3c] sm:$0xf]
        %v378 = vunpack.c.l.b16 %v330
        %v379 = vunpack.c.l.b16 %v331
        %v380 = vunpack.c.l.b16 %v332
        %v381 = vunpack.c.l.b16 %v333
        %v382 = vunpack.c.l.b16 %v334
        %v383 = vunpack.c.l.b16 %v335
        %v384 = vunpack.c.l.b16 %v336
        %v385 = vunpack.c.l.b16 %v337
        %v386 = vunpack.c.l.b16 %v338
        %v387 = vunpack.c.l.b16 %v339
        %v388 = vunpack.c.l.b16 %v340
        %v389 = vunpack.c.l.b16 %v341
        %v390 = vunpack.c.l.b16 %v342
        %v391 = vunpack.c.l.b16 %v343
        %v392 = vunpack.c.l.b16 %v344
        %v393 = vunpack.c.l.b16 %v345
        %v394 = vpack.c.b16 %v379, %v378
        %v395 = vpack.c.b16 %v381, %v380
        %v396 = vpack.c.b16 %v383, %v382
        %v397 = vpack.c.b16 %v385, %v384
        %v398 = vpack.c.b16 %v387, %v386
        %v399 = vpack.c.b16 %v389, %v388
        %v400 = vpack.c.b16 %v391, %v390
        %v401 = vpack.c.b16 %v393, %v392
        %v426 = vunpack.c.l.b16 %v346
        %v427 = vunpack.c.l.b16 %v347
        %v428 = vunpack.c.l.b16 %v348
        %v429 = vunpack.c.l.b16 %v349
        %v430 = vunpack.c.l.b16 %v350
        %v431 = vunpack.c.l.b16 %v351
        %v432 = vunpack.c.l.b16 %v352
        %v433 = vunpack.c.l.b16 %v353
        %v434 = vunpack.c.l.b16 %v354
        %v435 = vunpack.c.l.b16 %v355
        %v436 = vunpack.c.l.b16 %v356
        %v437 = vunpack.c.l.b16 %v357
        %v438 = vunpack.c.l.b16 %v358
        %v439 = vunpack.c.l.b16 %v359
        %v440 = vunpack.c.l.b16 %v360
        %v441 = vunpack.c.l.b16 %v361
        %v442 = vpack.c.b16 %v427, %v426
        %v443 = vpack.c.b16 %v429, %v428
        %v444 = vpack.c.b16 %v431, %v430
        %v445 = vpack.c.b16 %v433, %v432
        %v446 = vpack.c.b16 %v435, %v434
        %v447 = vpack.c.b16 %v437, %v436
        %v448 = vpack.c.b16 %v439, %v438
        %v449 = vpack.c.b16 %v441, %v440
        %458 = vmatprep.subr.bf16.mxu0 0
        %459 = vmatpush1.bf16.msra.mxu0 %v442
        %460 = vmatprep.subr.bf16.mxu0 0
        %461 = vmatpush1.bf16.msra.mxu0 %v443
        %462 = vmatprep.subr.bf16.mxu0 0
        %463 = vmatpush1.bf16.msra.mxu0 %v444
        %464 = vmatprep.subr.bf16.mxu0 0
        %465 = vmatpush1.bf16.msra.mxu0 %v445
        %466 = vmatprep.subr.bf16.mxu0 0
        %467 = vmatpush1.bf16.msra.mxu0 %v446
        %468 = vmatprep.subr.bf16.mxu0 0
        %469 = vmatpush1.bf16.msra.mxu0 %v447
        %470 = vmatprep.subr.bf16.mxu0 0
        %471 = vmatpush1.bf16.msra.mxu0 %v448
        %472 = vmatprep.subr.bf16.mxu0 0
        %473 = vmatpush1.bf16.msra.mxu0 %v449
        %474 = vmatprep.subr.bf16.mxu0 0
        %475 = vmatpush1.bf16.msra.mxu0 0
        %476 = vmatprep.subr.bf16.mxu0 0
        %477 = vmatpush1.bf16.msra.mxu0 0
        %478 = vmatprep.subr.bf16.mxu0 0
        %479 = vmatpush1.bf16.msra.mxu0 0
        %480 = vmatprep.subr.bf16.mxu0 0
        %481 = vmatpush1.bf16.msra.mxu0 0
        %482 = vmatprep.subr.bf16.mxu0 0
        %483 = vmatpush1.bf16.msra.mxu0 0
        %484 = vmatprep.subr.bf16.mxu0 0
        %485 = vmatpush1.bf16.msra.mxu0 0
        %486 = vmatprep.subr.bf16.mxu0 0
        %487 = vmatpush1.bf16.msra.mxu0 0
        %488 = vmatprep.subr.bf16.mxu0 0
        %489 = vmatpush1.bf16.msra.mxu0 0
        %490 = vmatprep.mubr.bf16.mxu0 0
        %491 = vmatmul.mubr.bf16.gmra.mrb[0].mxu0 %v394
        %v492 = vpop.f32.mrb[0].mxu0
        %v493 = vadd.f32 0.0, %v492
        %v494 = vpop.f32.mrb[0].mxu0
        %v495 = vpop.f32.mrb[0].mxu0
        %v496 = vadd.f32 0.0, %v495
        %v497 = vpop.f32.mrb[0].mxu0
        %498 = vmatprep.mubr.bf16.mxu0 0
        %499 = vmatmul.mubr.bf16.gmra.mrb[0].mxu0 %v395
        %v500 = vpop.f32.mrb[0].mxu0
        %v501 = vadd.f32 0.0, %v500
        %v502 = vpop.f32.mrb[0].mxu0
        %v503 = vpop.f32.mrb[0].mxu0
        %v504 = vadd.f32 0.0, %v503
        %v505 = vpop.f32.mrb[0].mxu0
        %506 = vmatprep.mubr.bf16.mxu0 0
        %507 = vmatmul.mubr.bf16.gmra.mrb[0].mxu0 %v396
        %v508 = vpop.f32.mrb[0].mxu0
        %v509 = vadd.f32 0.0, %v508
        %v510 = vpop.f32.mrb[0].mxu0
        %v511 = vpop.f32.mrb[0].mxu0
        %v512 = vadd.f32 0.0, %v511
        %v513 = vpop.f32.mrb[0].mxu0
        %514 = vmatprep.mubr.bf16.mxu0 0
        %515 = vmatmul.mubr.bf16.gmra.mrb[0].mxu0 %v397
        %v516 = vpop.f32.mrb[0].mxu0
        %v517 = vadd.f32 0.0, %v516
        %v518 = vpop.f32.mrb[0].mxu0
        %v519 = vpop.f32.mrb[0].mxu0
        %v520 = vadd.f32 0.0, %v519
        %v521 = vpop.f32.mrb[0].mxu0
        %522 = vmatprep.mubr.bf16.mxu0 0
        %523 = vmatmul.mubr.bf16.gmra.mrb[0].mxu0 %v398
        %v524 = vpop.f32.mrb[0].mxu0
        %v525 = vadd.f32 0.0, %v524
        %v526 = vpop.f32.mrb[0].mxu0
        %v527 = vpop.f32.mrb[0].mxu0
        %v528 = vadd.f32 0.0, %v527
        %v529 = vpop.f32.mrb[0].mxu0
        %530 = vmatprep.mubr.bf16.mxu0 0
        %531 = vmatmul.mubr.bf16.gmra.mrb[0].mxu0 %v399
        %v532 = vpop.f32.mrb[0].mxu0
        %v533 = vadd.f32 0.0, %v532
        %v534 = vpop.f32.mrb[0].mxu0
        %v535 = vpop.f32.mrb[0].mxu0
        %v536 = vadd.f32 0.0, %v535
        %v537 = vpop.f32.mrb[0].mxu0
        %538 = vmatprep.mubr.bf16.mxu0 0
        %539 = vmatmul.mubr.bf16.gmra.mrb[0].mxu0 %v400
        %v540 = vpop.f32.mrb[0].mxu0
        %v541 = vadd.f32 0.0, %v540
        %v542 = vpop.f32.mrb[0].mxu0
        %v543 = vpop.f32.mrb[0].mxu0
        %v544 = vadd.f32 0.0, %v543
        %v545 = vpop.f32.mrb[0].mxu0
        %546 = vmatprep.mubr.bf16.mxu0 0
        %547 = vmatmul.mubr.bf16.gmra.mrb[0].mxu0 %v401
        %v548 = vpop.f32.mrb[0].mxu0
        %v549 = vadd.f32 0.0, %v548
        %v550 = vpop.f32.mrb[0].mxu0
        %v551 = vpop.f32.mrb[0].mxu0
        %v552 = vadd.f32 0.0, %v551
        %v553 = vpop.f32.mrb[0].mxu0
        %554 = vdwg.mxu0
        %v555 = vmul.f32 %v493, 0.5
        %v556 = vmul.f32 %v496, 0.5
        %v557 = vmul.f32 %v501, 0.5
        %v558 = vmul.f32 %v504, 0.5
        %v559 = vmul.f32 %v509, 0.5
        %v560 = vmul.f32 %v512, 0.5
        %v561 = vmul.f32 %v517, 0.5
        %v562 = vmul.f32 %v520, 0.5
        %v563 = vmul.f32 %v525, 0.5
        %v564 = vmul.f32 %v528, 0.5
        %v565 = vmul.f32 %v533, 0.5
        %v566 = vmul.f32 %v536, 0.5
        %v567 = vmul.f32 %v541, 0.5
        %v568 = vmul.f32 %v544, 0.5
        %v569 = vmul.f32 %v549, 0.5
        %v570 = vmul.f32 %v552, 0.5
        %v571 = vmul.f32 %v493, 0.044715
        %v572 = vmul.f32 %v496, 0.044715
        %v573 = vmul.f32 %v501, 0.044715
        %v574 = vmul.f32 %v504, 0.044715
        %v575 = vmul.f32 %v509, 0.044715
        %v576 = vmul.f32 %v512, 0.044715
        %v577 = vmul.f32 %v517, 0.044715
        %v578 = vmul.f32 %v520, 0.044715
        %v579 = vmul.f32 %v525, 0.044715
        %v580 = vmul.f32 %v528, 0.044715
        %v581 = vmul.f32 %v533, 0.044715
        %v582 = vmul.f32 %v536, 0.044715
        %v583 = vmul.f32 %v541, 0.044715
        %v584 = vmul.f32 %v544, 0.044715
        %v585 = vmul.f32 %v549, 0.044715
        %v586 = vmul.f32 %v552, 0.044715
        %v587 = vmul.f32 %v571, %v493
        %v588 = vmul.f32 %v572, %v496
        %v589 = vmul.f32 %v573, %v501
        %v590 = vmul.f32 %v574, %v504
        %v591 = vmul.f32 %v575, %v509
        %v592 = vmul.f32 %v576, %v512
        %v593 = vmul.f32 %v577, %v517
        %v594 = vmul.f32 %v578, %v520
        %v595 = vmul.f32 %v579, %v525
        %v596 = vmul.f32 %v580, %v528
        %v597 = vmul.f32 %v581, %v533
        %v598 = vmul.f32 %v582, %v536
        %v599 = vmul.f32 %v583, %v541
        %v600 = vmul.f32 %v584, %v544
        %v601 = vmul.f32 %v585, %v549
        %v602 = vmul.f32 %v586, %v552
        %v603 = vmul.f32 %v587, %v493
        %v604 = vmul.f32 %v588, %v496
        %v605 = vmul.f32 %v589, %v501
        %v606 = vmul.f32 %v590, %v504
        %v607 = vmul.f32 %v591, %v509
        %v608 = vmul.f32 %v592, %v512
        %v609 = vmul.f32 %v593, %v517
        %v610 = vmul.f32 %v594, %v520
        %v611 = vmul.f32 %v595, %v525
        %v612 = vmul.f32 %v596, %v528
        %v613 = vmul.f32 %v597, %v533
        %v614 = vmul.f32 %v598, %v536
        %v615 = vmul.f32 %v599, %v541
        %v616 = vmul.f32 %v600, %v544
        %v617 = vmul.f32 %v601, %v549
        %v618 = vmul.f32 %v602, %v552
        %v619 = vadd.f32 %v493, %v603
        %v620 = vadd.f32 %v496, %v604
        %v621 = vadd.f32 %v501, %v605
        %v622 = vadd.f32 %v504, %v606
        %v623 = vadd.f32 %v509, %v607
        %v624 = vadd.f32 %v512, %v608
        %v625 = vadd.f32 %v517, %v609
        %v626 = vadd.f32 %v520, %v610
        %v627 = vadd.f32 %v525, %v611
        %v628 = vadd.f32 %v528, %v612
        %v629 = vadd.f32 %v533, %v613
        %v630 = vadd.f32 %v536, %v614
        %v631 = vadd.f32 %v541, %v615
        %v632 = vadd.f32 %v544, %v616
        %v633 = vadd.f32 %v549, %v617
        %v634 = vadd.f32 %v552, %v618
        %v635 = vmul.f32 %v619, 0.7978846
        %v636 = vmul.f32 %v620, 0.7978846
        %v637 = vmul.f32 %v621, 0.7978846
        %v638 = vmul.f32 %v622, 0.7978846
        %v639 = vmul.f32 %v623, 0.7978846
        %v640 = vmul.f32 %v624, 0.7978846
        %v641 = vmul.f32 %v625, 0.7978846
        %v642 = vmul.f32 %v626, 0.7978846
        %v643 = vmul.f32 %v627, 0.7978846
        %v644 = vmul.f32 %v628, 0.7978846
        %v645 = vmul.f32 %v629, 0.7978846
        %v646 = vmul.f32 %v630, 0.7978846
        %v647 = vmul.f32 %v631, 0.7978846
        %v648 = vmul.f32 %v632, 0.7978846
        %v649 = vmul.f32 %v633, 0.7978846
        %v650 = vmul.f32 %v634, 0.7978846
        %v651 = vtanh.pop %v635
        %v652 = vtanh.pop %v636
        %v653 = vtanh.pop %v637
        %v654 = vtanh.pop %v638
        %v655 = vtanh.pop %v639
        %v656 = vtanh.pop %v640
        %v657 = vtanh.pop %v641
        %v658 = vtanh.pop %v642
        %v659 = vtanh.pop %v643
        %v660 = vtanh.pop %v644
        %v661 = vtanh.pop %v645
        %v662 = vtanh.pop %v646
        %v663 = vtanh.pop %v647
        %v664 = vtanh.pop %v648
        %v665 = vtanh.pop %v649
        %v666 = vtanh.pop %v650
        %v667 = vadd.f32 %v651, 1.0
        %v668 = vadd.f32 %v652, 1.0
        %v669 = vadd.f32 %v653, 1.0
        %v670 = vadd.f32 %v654, 1.0
        %v671 = vadd.f32 %v655, 1.0
        %v672 = vadd.f32 %v656, 1.0
        %v673 = vadd.f32 %v657, 1.0
        %v674 = vadd.f32 %v658, 1.0
        %v675 = vadd.f32 %v659, 1.0
        %v676 = vadd.f32 %v660, 1.0
        %v677 = vadd.f32 %v661, 1.0
        %v678 = vadd.f32 %v662, 1.0
        %v679 = vadd.f32 %v663, 1.0
        %v680 = vadd.f32 %v664, 1.0
        %v681 = vadd.f32 %v665, 1.0
        %v682 = vadd.f32 %v666, 1.0
        %v683 = vmul.f32 %v555, %v667
        %v684 = vmul.f32 %v556, %v668
        %v685 = vmul.f32 %v557, %v669
        %v686 = vmul.f32 %v558, %v670
        %v687 = vmul.f32 %v559, %v671
        %v688 = vmul.f32 %v560, %v672
        %v689 = vmul.f32 %v561, %v673
        %v690 = vmul.f32 %v562, %v674
        %v691 = vmul.f32 %v563, %v675
        %v692 = vmul.f32 %v564, %v676
        %v693 = vmul.f32 %v565, %v677
        %v694 = vmul.f32 %v566, %v678
        %v695 = vmul.f32 %v567, %v679
        %v696 = vmul.f32 %v568, %v680
        %v697 = vmul.f32 %v569, %v681
        %v698 = vmul.f32 %v570, %v682
        %v699 = vld [vmem:[#allocation2] sm:$0xff]
        %v700 = vld [vmem:[#allocation2 + $0x8] sm:$0xff]
        %v701 = vld [vmem:[#allocation2 + $0x10] sm:$0xff]
        %v702 = vld [vmem:[#allocation2 + $0x18] sm:$0xff]
        %v703 = vld [vmem:[#allocation2 + $0x20] sm:$0xff]
        %v704 = vld [vmem:[#allocation2 + $0x28] sm:$0xff]
        %v705 = vld [vmem:[#allocation2 + $0x30] sm:$0xff]
        %v706 = vld [vmem:[#allocation2 + $0x38] sm:$0xff]
        %v707 = vld [vmem:[#allocation2 + $0x40] sm:$0xff]
        %v708 = vld [vmem:[#allocation2 + $0x48] sm:$0xff]
        %v709 = vld [vmem:[#allocation2 + $0x50] sm:$0xff]
        %v710 = vld [vmem:[#allocation2 + $0x58] sm:$0xff]
        %v711 = vld [vmem:[#allocation2 + $0x60] sm:$0xff]
        %v712 = vld [vmem:[#allocation2 + $0x68] sm:$0xff]
        %v713 = vld [vmem:[#allocation2 + $0x70] sm:$0xff]
        %v714 = vld [vmem:[#allocation2 + $0x78] sm:$0xff]
        %v715 = vpack.c.bf16 %v684, %v683
        %v716 = vpack.c.bf16 %v686, %v685
        %v717 = vpack.c.bf16 %v688, %v687
        %v718 = vpack.c.bf16 %v690, %v689
        %v719 = vpack.c.bf16 %v692, %v691
        %v720 = vpack.c.bf16 %v694, %v693
        %v721 = vpack.c.bf16 %v696, %v695
        %v722 = vpack.c.bf16 %v698, %v697
        %v723 = vld [vmem:[%s267] sm:$0xf]
        %v724 = vld [vmem:[%s267 + $0x4] sm:$0xf]
        %v725 = vld [vmem:[%s267 + $0x8] sm:$0xf]
        %v726 = vld [vmem:[%s267 + $0xc] sm:$0xf]
        %v727 = vld [vmem:[%s267 + $0x10] sm:$0xf]
        %v728 = vld [vmem:[%s267 + $0x14] sm:$0xf]
        %v729 = vld [vmem:[%s267 + $0x18] sm:$0xf]
        %v730 = vld [vmem:[%s267 + $0x1c] sm:$0xf]
        %v731 = vld [vmem:[%s267 + $0x20] sm:$0xf]
        %v732 = vld [vmem:[%s267 + $0x24] sm:$0xf]
        %v733 = vld [vmem:[%s267 + $0x28] sm:$0xf]
        %v734 = vld [vmem:[%s267 + $0x2c] sm:$0xf]
        %v735 = vld [vmem:[%s267 + $0x30] sm:$0xf]
        %v736 = vld [vmem:[%s267 + $0x34] sm:$0xf]
        %v737 = vld [vmem:[%s267 + $0x38] sm:$0xf]
        %v738 = vld [vmem:[%s267 + $0x3c] sm:$0xf]
        %v755 = vunpack.c.l.b16 %v723
        %v756 = vunpack.c.l.b16 %v724
        %v757 = vunpack.c.l.b16 %v725
        %v758 = vunpack.c.l.b16 %v726
        %v759 = vunpack.c.l.b16 %v727
        %v760 = vunpack.c.l.b16 %v728
        %v761 = vunpack.c.l.b16 %v729
        %v762 = vunpack.c.l.b16 %v730
        %v763 = vunpack.c.l.b16 %v731
        %v764 = vunpack.c.l.b16 %v732
        %v765 = vunpack.c.l.b16 %v733
        %v766 = vunpack.c.l.b16 %v734
        %v767 = vunpack.c.l.b16 %v735
        %v768 = vunpack.c.l.b16 %v736
        %v769 = vunpack.c.l.b16 %v737
        %v770 = vunpack.c.l.b16 %v738
        %v771 = vpack.c.b16 %v756, %v755
        %v772 = vpack.c.b16 %v758, %v757
        %v773 = vpack.c.b16 %v760, %v759
        %v774 = vpack.c.b16 %v762, %v761
        %v775 = vpack.c.b16 %v764, %v763
        %v776 = vpack.c.b16 %v766, %v765
        %v777 = vpack.c.b16 %v768, %v767
        %v778 = vpack.c.b16 %v770, %v769
        %787 = vmatprep.subr.bf16.mxu0 0
        %788 = vmatpush1.bf16.msra.mxu0 %v771
        %789 = vmatprep.subr.bf16.mxu0 0
        %790 = vmatpush1.bf16.msra.mxu0 %v772
        %791 = vmatprep.subr.bf16.mxu0 0
        %792 = vmatpush1.bf16.msra.mxu0 %v773
        %793 = vmatprep.subr.bf16.mxu0 0
        %794 = vmatpush1.bf16.msra.mxu0 %v774
        %795 = vmatprep.subr.bf16.mxu0 0
        %796 = vmatpush1.bf16.msra.mxu0 %v775
        %797 = vmatprep.subr.bf16.mxu0 0
        %798 = vmatpush1.bf16.msra.mxu0 %v776
        %799 = vmatprep.subr.bf16.mxu0 0
        %800 = vmatpush1.bf16.msra.mxu0 %v777
        %801 = vmatprep.subr.bf16.mxu0 0
        %802 = vmatpush1.bf16.msra.mxu0 %v778
        %803 = vmatprep.subr.bf16.mxu0 0
        %804 = vmatpush1.bf16.msra.mxu0 0
        %805 = vmatprep.subr.bf16.mxu0 0
        %806 = vmatpush1.bf16.msra.mxu0 0
        %807 = vmatprep.subr.bf16.mxu0 0
        %808 = vmatpush1.bf16.msra.mxu0 0
        %809 = vmatprep.subr.bf16.mxu0 0
        %810 = vmatpush1.bf16.msra.mxu0 0
        %811 = vmatprep.subr.bf16.mxu0 0
        %812 = vmatpush1.bf16.msra.mxu0 0
        %813 = vmatprep.subr.bf16.mxu0 0
        %814 = vmatpush1.bf16.msra.mxu0 0
        %815 = vmatprep.subr.bf16.mxu0 0
        %816 = vmatpush1.bf16.msra.mxu0 0
        %817 = vmatprep.subr.bf16.mxu0 0
        %818 = vmatpush1.bf16.msra.mxu0 0
        %819 = vmatprep.mubr.bf16.mxu0 0
        %820 = vmatmul.mubr.bf16.gmra.mrb[0].mxu0 %v715
        %v821 = vpop.f32.mrb[0].mxu0
        %v822 = vadd.f32 0.0, %v821
        %v823 = vpop.f32.mrb[0].mxu0
        %v824 = vpop.f32.mrb[0].mxu0
        %v825 = vadd.f32 0.0, %v824
        %v826 = vpop.f32.mrb[0].mxu0
        %827 = vmatprep.mubr.bf16.mxu0 0
        %828 = vmatmul.mubr.bf16.gmra.mrb[0].mxu0 %v716
        %v829 = vpop.f32.mrb[0].mxu0
        %v830 = vadd.f32 0.0, %v829
        %v831 = vpop.f32.mrb[0].mxu0
        %v832 = vpop.f32.mrb[0].mxu0
        %v833 = vadd.f32 0.0, %v832
        %v834 = vpop.f32.mrb[0].mxu0
        %835 = vmatprep.mubr.bf16.mxu0 0
        %836 = vmatmul.mubr.bf16.gmra.mrb[0].mxu0 %v717
        %v837 = vpop.f32.mrb[0].mxu0
        %v838 = vadd.f32 0.0, %v837
        %v839 = vpop.f32.mrb[0].mxu0
        %v840 = vpop.f32.mrb[0].mxu0
        %v841 = vadd.f32 0.0, %v840
        %v842 = vpop.f32.mrb[0].mxu0
        %843 = vmatprep.mubr.bf16.mxu0 0
        %844 = vmatmul.mubr.bf16.gmra.mrb[0].mxu0 %v718
        %v845 = vpop.f32.mrb[0].mxu0
        %v846 = vadd.f32 0.0, %v845
        %v847 = vpop.f32.mrb[0].mxu0
        %v848 = vpop.f32.mrb[0].mxu0
        %v849 = vadd.f32 0.0, %v848
        %v850 = vpop.f32.mrb[0].mxu0
        %851 = vmatprep.mubr.bf16.mxu0 0
        %852 = vmatmul.mubr.bf16.gmra.mrb[0].mxu0 %v719
        %v853 = vpop.f32.mrb[0].mxu0
        %v854 = vadd.f32 0.0, %v853
        %v855 = vpop.f32.mrb[0].mxu0
        %v856 = vpop.f32.mrb[0].mxu0
        %v857 = vadd.f32 0.0, %v856
        %v858 = vpop.f32.mrb[0].mxu0
        %859 = vmatprep.mubr.bf16.mxu0 0
        %860 = vmatmul.mubr.bf16.gmra.mrb[0].mxu0 %v720
        %v861 = vpop.f32.mrb[0].mxu0
        %v862 = vadd.f32 0.0, %v861
        %v863 = vpop.f32.mrb[0].mxu0
        %v864 = vpop.f32.mrb[0].mxu0
        %v865 = vadd.f32 0.0, %v864
        %v866 = vpop.f32.mrb[0].mxu0
        %867 = vmatprep.mubr.bf16.mxu0 0
        %868 = vmatmul.mubr.bf16.gmra.mrb[0].mxu0 %v721
        %v869 = vpop.f32.mrb[0].mxu0
        %v870 = vadd.f32 0.0, %v869
        %v871 = vpop.f32.mrb[0].mxu0
        %v872 = vpop.f32.mrb[0].mxu0
        %v873 = vadd.f32 0.0, %v872
        %v874 = vpop.f32.mrb[0].mxu0
        %875 = vmatprep.mubr.bf16.mxu0 0
        %876 = vmatmul.mubr.bf16.gmra.mrb[0].mxu0 %v722
        %v877 = vpop.f32.mrb[0].mxu0
        %v878 = vadd.f32 0.0, %v877
        %v879 = vpop.f32.mrb[0].mxu0
        %v880 = vpop.f32.mrb[0].mxu0
        %v881 = vadd.f32 0.0, %v880
        %v882 = vpop.f32.mrb[0].mxu0
        %883 = vdwg.mxu0
        %v884 = vadd.f32 %v699, %v822
        %v885 = vadd.f32 %v700, %v825
        %v886 = vadd.f32 %v701, %v830
        %v887 = vadd.f32 %v702, %v833
        %v888 = vadd.f32 %v703, %v838
        %v889 = vadd.f32 %v704, %v841
        %v890 = vadd.f32 %v705, %v846
        %v891 = vadd.f32 %v706, %v849
        %v892 = vadd.f32 %v707, %v854
        %v893 = vadd.f32 %v708, %v857
        %v894 = vadd.f32 %v709, %v862
        %v895 = vadd.f32 %v710, %v865
        %v896 = vadd.f32 %v711, %v870
        %v897 = vadd.f32 %v712, %v873
        %v898 = vadd.f32 %v713, %v878
        %v899 = vadd.f32 %v714, %v881
        %900 = vst [vmem:[#allocation2] sm:$0xff] %v884
        %901 = vst [vmem:[#allocation2 + $0x8] sm:$0xff] %v885
        %902 = vst [vmem:[#allocation2 + $0x10] sm:$0xff] %v886
        %903 = vst [vmem:[#allocation2 + $0x18] sm:$0xff] %v887
        %904 = vst [vmem:[#allocation2 + $0x20] sm:$0xff] %v888
        %905 = vst [vmem:[#allocation2 + $0x28] sm:$0xff] %v889
        %906 = vst [vmem:[#allocation2 + $0x30] sm:$0xff] %v890
        %907 = vst [vmem:[#allocation2 + $0x38] sm:$0xff] %v891
        %908 = vst [vmem:[#allocation2 + $0x40] sm:$0xff] %v892
        %909 = vst [vmem:[#allocation2 + $0x48] sm:$0xff] %v893
        %910 = vst [vmem:[#allocation2 + $0x50] sm:$0xff] %v894
        %911 = vst [vmem:[#allocation2 + $0x58] sm:$0xff] %v895
        %912 = vst [vmem:[#allocation2 + $0x60] sm:$0xff] %v896
        %913 = vst [vmem:[#allocation2 + $0x68] sm:$0xff] %v897
        %914 = vst [vmem:[#allocation2 + $0x70] sm:$0xff] %v898
        %915 = vst [vmem:[#allocation2 + $0x78] sm:$0xff] %v899
        %p916 = scmp.eq.s32.totalorder %s33, 1
        // Predicated region
        $region49: #{tpu_custom_call.1} parent=31 // pred_check
          %p917 = pneg %p916
        $region50: #{tpu_custom_call.1} parent=31 // pred_check_branch
          %919 = sbr.rel (%p917) target = $region52
        $region51: #{tpu_custom_call.1} parent=31 // pred_region
          %v920 = vld [vmem:[#allocation2] sm:$0xff]
          %v921 = vld [vmem:[#allocation2 + $0x8] sm:$0xff]
          %v922 = vld [vmem:[#allocation2 + $0x10] sm:$0xff]
          %v923 = vld [vmem:[#allocation2 + $0x18] sm:$0xff]
          %v924 = vld [vmem:[#allocation2 + $0x20] sm:$0xff]
          %v925 = vld [vmem:[#allocation2 + $0x28] sm:$0xff]
          %v926 = vld [vmem:[#allocation2 + $0x30] sm:$0xff]
          %v927 = vld [vmem:[#allocation2 + $0x38] sm:$0xff]
          %v928 = vld [vmem:[#allocation2 + $0x40] sm:$0xff]
          %v929 = vld [vmem:[#allocation2 + $0x48] sm:$0xff]
          %v930 = vld [vmem:[#allocation2 + $0x50] sm:$0xff]
          %v931 = vld [vmem:[#allocation2 + $0x58] sm:$0xff]
          %v932 = vld [vmem:[#allocation2 + $0x60] sm:$0xff]
          %v933 = vld [vmem:[#allocation2 + $0x68] sm:$0xff]
          %v934 = vld [vmem:[#allocation2 + $0x70] sm:$0xff]
          %v935 = vld [vmem:[#allocation2 + $0x78] sm:$0xff]
          %v936 = vpack.c.bf16 %v921, %v920
          %v937 = vpack.c.bf16 %v923, %v922
          %v938 = vpack.c.bf16 %v925, %v924
          %v939 = vpack.c.bf16 %v927, %v926
          %v940 = vpack.c.bf16 %v929, %v928
          %v941 = vpack.c.bf16 %v931, %v930
          %v942 = vpack.c.bf16 %v933, %v932
          %v943 = vpack.c.bf16 %v935, %v934
          %v952 = vunpack.c.l.b16 %v936
          %v953 = vunpack.c.h.b16 %v936
          %v954 = vunpack.c.l.b16 %v937
          %v955 = vunpack.c.h.b16 %v937
          %v956 = vunpack.c.l.b16 %v938
          %v957 = vunpack.c.h.b16 %v938
          %v958 = vunpack.c.l.b16 %v939
          %v959 = vunpack.c.h.b16 %v939
          %v960 = vunpack.c.l.b16 %v940
          %v961 = vunpack.c.h.b16 %v940
          %v962 = vunpack.c.l.b16 %v941
          %v963 = vunpack.c.h.b16 %v941
          %v964 = vunpack.c.l.b16 %v942
          %v965 = vunpack.c.h.b16 %v942
          %v966 = vunpack.c.l.b16 %v943
          %v967 = vunpack.c.h.b16 %v943
          %v968 = vpack.c.b16 %v952, %v952
          %v969 = vpack.c.b16 %v953, %v953
          %v970 = vpack.c.b16 %v954, %v954
          %v971 = vpack.c.b16 %v955, %v955
          %v972 = vpack.c.b16 %v956, %v956
          %v973 = vpack.c.b16 %v957, %v957
          %v974 = vpack.c.b16 %v958, %v958
          %v975 = vpack.c.b16 %v959, %v959
          %v976 = vpack.c.b16 %v960, %v960
          %v977 = vpack.c.b16 %v961, %v961
          %v978 = vpack.c.b16 %v962, %v962
          %v979 = vpack.c.b16 %v963, %v963
          %v980 = vpack.c.b16 %v964, %v964
          %v981 = vpack.c.b16 %v965, %v965
          %v982 = vpack.c.b16 %v966, %v966
          %v983 = vpack.c.b16 %v967, %v967
          %1000 = vst [vmem:[%s299] sm:$0xf] %v968
          %1001 = vst [vmem:[%s299 + $0x4] sm:$0xf] %v969
          %1002 = vst [vmem:[%s299 + $0x8] sm:$0xf] %v970
          %1003 = vst [vmem:[%s299 + $0xc] sm:$0xf] %v971
          %1004 = vst [vmem:[%s299 + $0x10] sm:$0xf] %v972
          %1005 = vst [vmem:[%s299 + $0x14] sm:$0xf] %v973
          %1006 = vst [vmem:[%s299 + $0x18] sm:$0xf] %v974
          %1007 = vst [vmem:[%s299 + $0x1c] sm:$0xf] %v975
          %1008 = vst [vmem:[%s299 + $0x20] sm:$0xf] %v976
          %1009 = vst [vmem:[%s299 + $0x24] sm:$0xf] %v977
          %1010 = vst [vmem:[%s299 + $0x28] sm:$0xf] %v978
          %1011 = vst [vmem:[%s299 + $0x2c] sm:$0xf] %v979
          %1012 = vst [vmem:[%s299 + $0x30] sm:$0xf] %v980
          %1013 = vst [vmem:[%s299 + $0x34] sm:$0xf] %v981
          %1014 = vst [vmem:[%s299 + $0x38] sm:$0xf] %v982
          %1015 = vst [vmem:[%s299 + $0x3c] sm:$0xf] %v983
        $region52: #{tpu_custom_call.1} parent=31 // pred_fallthru
          _
        %s1016 = sand.u32 %s138, 1
        %s1017 = scalar_lea.sflag [#allocation7], %s1016
        %s1018 = sand.u32 %s138, 1
        %s1019 = smul.addr %s1018, 64
        %s1020 = scalar_lea.vmem [#allocation11], %s1019
        // Predicated region
        $region53: #{tpu_custom_call.1} parent=31 // pred_check
          %p1021 = pneg %p148
        $region54: #{tpu_custom_call.1} parent=31 // pred_check_branch
          %1023 = sbr.rel (%p1021) target = $region56
        $region55: #{tpu_custom_call.1} parent=31 // pred_region
          %s1024 = smul.u32 16, %s32
          %s1026 = ssub.s32 1024, 1024
          %1027 = vsyncadd %s1017, %s1026
          %s1028 = smul.addr %s1024, 64
          %s1029 = scalar_lea.hbm %s4, %s1028
          %s1030 = sshll.u32 %s1020, 4
          %s1031 = int_to_ptr.vmem [resolvable:$true] %s1030
          %1036 = dma.vmem_to_hbm [thread:$0]  %s1031, 1024, %s1029, %s1017, 64, 64, 4
        $region56: #{tpu_custom_call.1} parent=31 // pred_fallthru
          _
      $region32: #{tpu_custom_call.1} parent=5 // pred_fallthru
        _
      %p1037 = scmp.le.s32.totalorder 2, %s23
      // Predicated region
      $region57: #{tpu_custom_call.1} parent=5 // pred_check
        %p1038 = pneg %p1037
      $region58: #{tpu_custom_call.1} parent=5 // pred_check_branch
        %1040 = sbr.rel (%p1038) target = $region60
      $region59: #{tpu_custom_call.1} parent=5 // pred_region
        %s1041 = ssub.s32 %s23, 2
        // Predicated region
        $region61: #{tpu_custom_call.1} parent=59 // pred_check
          %p1042 = pneg %p154
        $region62: #{tpu_custom_call.1} parent=59 // pred_check_branch
          %1044 = sbr.rel (%p1042) target = $region64
        $region63: #{tpu_custom_call.1} parent=59 // pred_region
          %s1045 = sand.u32 %s139, 1
          %s1046 = scalar_lea.sflag [#allocation7], %s1045
          %s1047 = sand.u32 %s139, 1
          %s1048 = smul.addr %s1047, 64
          %s1049 = scalar_lea.vmem [#allocation11], %s1048
          %1050 = dma.done %s1046, 1024
        $region64: #{tpu_custom_call.1} parent=59 // pred_fallthru
          _
      $region60: #{tpu_custom_call.1} parent=5 // pred_fallthru
        _
    $region6: #{tpu_custom_call.1} parent=1 // loop_footer
      %s27 = sadd.s32 1, %s23
    $region7: #{tpu_custom_call.1} parent=1 // loop_footer_branch
      %22 = sbr.rel target = $region3
    $region8: #{tpu_custom_call.1} parent=1 // loop_exit
      _
    %1051 = vsyncpa [#allocation6], 1
    %s1052 = scalar_lea.sflag [#allocation6], 1
    %1053 = vsyncpa %s1052, 1
    %1054 = vsyncpa [#allocation9], 1
    %s1055 = scalar_lea.sflag [#allocation9], 1
    %1056 = vsyncpa %s1055, 1
    %1057 = vsyncpa [#allocation7], 1
    %s1058 = scalar_lea.sflag [#allocation7], 1
    %1059 = vsyncpa %s1058, 1

</llo_original>
